<compile_context>
chip_gen: v6e
topology: v6e:2x2x1
jax: 0.10.0
libtpu: 0.0.40
codegen_flags: <defaults>
</compile_context>

<pallas_src>
import functools
import math

import jax
import jax.numpy as jnp
from jax.experimental import pallas as pl
from jax.experimental.pallas import tpu as pltpu


def make_positional_encoding(d_model: int, max_len: int = 5000,
                             dtype=jnp.float32) -> jnp.ndarray:
    """Replicates PositionalEncoding.__init__ buffer `pe` of shape (max_len, d_model)."""
    position = jnp.arange(max_len, dtype=jnp.float32)[:, None]            # (max_len, 1)
    div_term = jnp.exp(
        jnp.arange(0, d_model, 2, dtype=jnp.float32) * (-math.log(10000.0) / d_model)
    )                                                                      # (d_model//2,)
    angles = position * div_term                                           # (max_len, d_model//2)
    pe = jnp.zeros((max_len, d_model), dtype=jnp.float32)
    pe = pe.at[:, 0::2].set(jnp.sin(angles))
    pe = pe.at[:, 1::2].set(jnp.cos(angles))
    return pe.astype(dtype)


def _add_pe_kernel(x_ref, pe_ref, o_ref):
    """out = x + pe  (eval mode / p == 0)."""
    y = x_ref[...].astype(jnp.float32) + pe_ref[...].astype(jnp.float32)
    o_ref[...] = y.astype(o_ref.dtype)


def _add_pe_dropout_kernel(x_ref, pe_ref, bits_ref, o_ref, *, threshold: int, scale: float):
    """out = dropout(x + pe, p). bits are uniform int32 in [0, 2^24); drop iff bits < threshold."""
    y = x_ref[...].astype(jnp.float32) + pe_ref[...].astype(jnp.float32)
    keep = bits_ref[...] >= threshold                 # integer compare, no f32 convert
    y = jnp.where(keep, y * scale, 0.0)
    o_ref[...] = y.astype(o_ref.dtype)


def positional_encoding_forward(x, pe, *, p: float = 0.1, training: bool = False,
                                rng_key=None, target_block_bytes: int = 2 << 20):
    """x: (S, D); pe: (max_len, D). Returns dropout(x + pe[:S], p) with torch semantics."""
    S, D = x.shape
    max_len, D_pe = pe.shape
    assert D == D_pe and S <= max_len
    pe = pe.astype(x.dtype)  # keep HBM-side dtype identical to x

    # ---- layout: make the kernel lane-dense (last dim a multiple of 128) when possible ----
    if D % 128 == 0:
        lanes = D
        x2, pe2, rows = x, pe, S
    elif (S * D) % 128 == 0 and (max_len * D) % 128 == 0:
        lanes = 128
        rows = (S * D) // 128
        x2 = x.reshape(rows, lanes)                    # free: contiguous row-major
        pe2 = pe.reshape((max_len * D) // 128, lanes)  # free: contiguous row-major
    else:
        lanes = D                                      # fallback: full-D blocks
        x2, pe2, rows = x, pe, S

    # ---- block size: ~target_block_bytes per buffer, multiple of 8 rows ----
    row_bytes = lanes * x.dtype.itemsize
    tile_rows = max(1, target_block_bytes // row_bytes)
    if tile_rows >= rows:
        tile_rows = rows
    else:
        tile_rows = max(8, (tile_rows // 8) * 8)
    if tile_rows % 8 != 0:
        # Tiny array: block rows must equal the full sublane extent of every operand,
        # so shrink pe to exactly the rows we need (negligible cost at this size).
        pe2 = pe2[:rows]

    grid = (pl.cdiv(rows, tile_rows),)
    block = pl.BlockSpec((tile_rows, lanes), lambda i: (i, 0))

    if training and p > 0.0:
        assert rng_key is not None, "training=True requires rng_key"
        # TODO(synk): in-kernel pltpu.prng_random_bits would avoid this extra HBM read,
        # but it has no lowering under interpret/CPU, so bits come from the wrapper.
        bits = jax.random.randint(rng_key, (rows, lanes), 0, 1 << 24, dtype=jnp.int32)
        kernel = functools.partial(
            _add_pe_dropout_kernel,
            threshold=int(round(p * (1 << 24))),
            scale=float(1.0 / (1.0 - p)),
        )
        in_specs = [block, block, block]
        args = (x2, pe2, bits)
    else:
        kernel = _add_pe_kernel
        in_specs = [block, block]
        args = (x2, pe2)

    out2 = pl.pallas_call(
        kernel,
        out_shape=jax.ShapeDtypeStruct((rows, lanes), x.dtype),
        grid=grid,
        in_specs=in_specs,
        out_specs=block,
        compiler_params=pltpu.CompilerParams(
            dimension_semantics=("parallel",),  # tiles independent -> megacore-friendly
        ),
    )(*args)
    return out2.reshape(S, D)


if __name__ == "__main__":
    d_model = 32
    max_len = 64
    seq_len = 16
    dropout_p = 0.1

    key = jax.random.PRNGKey(0)
    kx, kd = jax.random.split(key)
    x = jax.random.normal(kx, (seq_len, d_model), dtype=jnp.float32)
    pe = make_positional_encoding(d_model, max_len, dtype=x.dtype)

    # Eval-mode forward (dropout is identity): check against pure-JAX reference.
    out_eval = jax.block_until_ready(
        positional_encoding_forward(x, pe, p=dropout_p, training=False))
    ref = x + pe[:seq_len]
    assert jnp.allclose(out_eval, ref, atol=1e-6), "eval-mode mismatch"

    # Training-mode forward: each element must be either 0 (dropped) or (x+pe)/(1-p).
    out_train = jax.block_until_ready(
        positional_encoding_forward(x, pe, p=dropout_p, training=True, rng_key=kd))
    assert out_train.shape == (seq_len, d_model)
    scaled = ref / (1.0 - dropout_p)
    ok = jnp.isclose(out_train, scaled, atol=1e-5) | (out_train == 0.0)
    assert bool(jnp.all(ok)), "training-mode dropout mismatch"

    print("KERNEL_OK")
</pallas_src>

<mosaic_0001>
module attributes {stable_mosaic.version = 11 : i64} {
  func.func @_add_pe_kernel(%arg0: i32, %arg1: memref<4x128xf32, #tpu.memory_space<vmem>>, %arg2: memref<4x128xf32, #tpu.memory_space<vmem>>, %arg3: memref<4x128xf32, #tpu.memory_space<vmem>>) attributes {dimension_semantics = [#tpu.dimension_semantics<parallel>], iteration_bounds = array<i64: 1>, scalar_prefetch = 0 : i64, scratch_operands = 0 : i64, tpu.core_type = #tpu.core_type<tc>, window_params = [{transform_indices = @transform_0, window_bounds = array<i64: 4, 128>}, {transform_indices = @transform_1, window_bounds = array<i64: 4, 128>}, {transform_indices = @transform_2, window_bounds = array<i64: 4, 128>}]} {
    %c0 = arith.constant 0 : index
    %c0_0 = arith.constant 0 : index
    %0 = vector.load %arg1[%c0, %c0_0] : memref<4x128xf32, #tpu.memory_space<vmem>>, vector<4x128xf32>
    %c0_1 = arith.constant 0 : index
    %c0_2 = arith.constant 0 : index
    %1 = vector.load %arg2[%c0_1, %c0_2] : memref<4x128xf32, #tpu.memory_space<vmem>>, vector<4x128xf32>
    %2 = arith.addf %0, %1 : vector<4x128xf32>
    %c0_3 = arith.constant 0 : index
    %c0_4 = arith.constant 0 : index
    %3 = vector.load %arg3[%c0_3, %c0_4] : memref<4x128xf32, #tpu.memory_space<vmem>>, vector<4x128xf32>
    tpu.vector_store %arg3[%c0_3, %c0_4], %2 {strides = array<i32>} : memref<4x128xf32, #tpu.memory_space<vmem>>, vector<4x128xf32>,
    return
  }
  func.func @transform_0(%arg0: i32) -> (i32, i32) {
    %c0_i32 = arith.constant 0 : i32
    %c0_i32_0 = arith.constant 0 : i32
    return %arg0, %c0_i32 : i32, i32
  }
  func.func @transform_1(%arg0: i32) -> (i32, i32) {
    %c0_i32 = arith.constant 0 : i32
    %c0_i32_0 = arith.constant 0 : i32
    return %arg0, %c0_i32 : i32, i32
  }
  func.func @transform_2(%arg0: i32) -> (i32, i32) {
    %c0_i32 = arith.constant 0 : i32
    %c0_i32_0 = arith.constant 0 : i32
    return %arg0, %c0_i32 : i32, i32
  }
}

</mosaic_0001>

<llo_original>
// kernel: tpu_custom_call.1
$region0: #{tpu_custom_call.1}
  #allocation0 [shape = 'u32[]', space=smem, size = 0x4, offset = 0x4, fixed_abs, tag = 'smem constant byte address 0x4 - core index']
  #allocation1 [shape = 'u32[144,128]{1,0:T(1,128)}', space=vmem, size = 0x12000, scoped, tag = 'internal scratch']
  %s0 = inlined_call_operand.hbm [shape: f32[4,128], index: 0, kind: input, shape index: {}]
  %s1 = inlined_call_operand.hbm [shape: f32[4,128], index: 1, kind: input, shape index: {}]
  %s2 = inlined_call_operand.hbm [shape: f32[4,128], index: 2, kind: output, shape index: {}]
  %s3 = sld [smem:[#allocation0]]
  $region26: #{tpu_custom_call.1} parent=0
    _
  %s5 = ssub.s32 1, %s3
  %s6 = scalar_select 0, %s5, %s3
  $region1: #{tpu_custom_call.1} parent=0
    #allocation2 [shape = 'u8[2048]{0}', space=vmem, size = 0x800, scoped, tag = 'input window, operand 0, single buffered']
    #allocation3 [shape = 's32[1]{0}', space=sflag, size = 0x4, scoped, tag = 'scoped memory for tpu_custom_call.1']
    #allocation4 [shape = 's32[1]{0}', space=sflag, size = 0x4, scoped, tag = 'scoped memory for tpu_custom_call.1']
    #allocation5 [shape = 'u8[2048]{0}', space=vmem, size = 0x800, scoped, tag = 'input window, operand 1, single buffered']
    #allocation6 [shape = 's32[1]{0}', space=sflag, size = 0x4, scoped, tag = 'scoped memory for tpu_custom_call.1']
    #allocation7 [shape = 'u8[2048]{0}', space=vmem, size = 0x800, scoped, tag = 'output window, operand 0, single buffered']
    %7 = vsyncpa [#allocation3], 0
    %8 = vsyncpa [#allocation6], 0
    %9 = vsyncpa [#allocation4], 0
    // Predicated region
    $region2: #{tpu_custom_call.1} parent=1 // pred_check
      _
    $region3: #{tpu_custom_call.1} parent=1 // pred_check_branch
      %11 = sbr.rel (0) target = $region5
    $region4: #{tpu_custom_call.1} parent=1 // pred_region
      %s13 = ssub.s32 64, 64
      %14 = vsyncadd [#allocation3], %s13
      %s16 = sshll.u32 [#allocation2], 4
      %s17 = int_to_ptr.vmem [resolvable:$true] %s16
      %19 = dma.hbm_to_vmem [thread:$0]  %s0, 64, %s17, [#allocation3]
    $region5: #{tpu_custom_call.1} parent=1 // pred_fallthru
      _
    // Predicated region
    $region6: #{tpu_custom_call.1} parent=1 // pred_check
      _
    $region7: #{tpu_custom_call.1} parent=1 // pred_check_branch
      %21 = sbr.rel (0) target = $region9
    $region8: #{tpu_custom_call.1} parent=1 // pred_region
      %s23 = ssub.s32 64, 64
      %24 = vsyncadd [#allocation6], %s23
      %s26 = sshll.u32 [#allocation5], 4
      %s27 = int_to_ptr.vmem [resolvable:$true] %s26
      %29 = dma.hbm_to_vmem [thread:$0]  %s1, 64, %s27, [#allocation6]
    $region9: #{tpu_custom_call.1} parent=1 // pred_fallthru
      _
    // Predicated region
    $region10: #{tpu_custom_call.1} parent=1 // pred_check
      _
    $region11: #{tpu_custom_call.1} parent=1 // pred_check_branch
      %31 = sbr.rel (0) target = $region13
    $region12: #{tpu_custom_call.1} parent=1 // pred_region
      %32 = dma.done [#allocation3], 64
    $region13: #{tpu_custom_call.1} parent=1 // pred_fallthru
      _
    // Predicated region
    $region14: #{tpu_custom_call.1} parent=1 // pred_check
      _
    $region15: #{tpu_custom_call.1} parent=1 // pred_check_branch
      %34 = sbr.rel (0) target = $region17
    $region16: #{tpu_custom_call.1} parent=1 // pred_region
      %35 = dma.done [#allocation6], 64
    $region17: #{tpu_custom_call.1} parent=1 // pred_fallthru
      _
    %v36 = vld [vmem:[#allocation2] sm:$0xf]
    %v37 = vld [vmem:[#allocation5] sm:$0xf]
    %v38 = vadd.f32 %v36, %v37
    %39 = vst [vmem:[#allocation7] sm:$0xf] %v38
    // Predicated region
    $region18: #{tpu_custom_call.1} parent=1 // pred_check
      _
    $region19: #{tpu_custom_call.1} parent=1 // pred_check_branch
      %41 = sbr.rel (0) target = $region21
    $region20: #{tpu_custom_call.1} parent=1 // pred_region
      %s43 = ssub.s32 64, 64
      %44 = vsyncadd [#allocation4], %s43
      %s46 = sshll.u32 [#allocation7], 4
      %s47 = int_to_ptr.vmem [resolvable:$true] %s46
      %49 = dma.vmem_to_hbm [thread:$0]  %s47, 64, %s2, [#allocation4]
    $region21: #{tpu_custom_call.1} parent=1 // pred_fallthru
      _
    // Predicated region
    $region22: #{tpu_custom_call.1} parent=1 // pred_check
      _
    $region23: #{tpu_custom_call.1} parent=1 // pred_check_branch
      %51 = sbr.rel (0) target = $region25
    $region24: #{tpu_custom_call.1} parent=1 // pred_region
      %52 = dma.done [#allocation4], 64
    $region25: #{tpu_custom_call.1} parent=1 // pred_fallthru
      _
    %53 = vsyncpa [#allocation3], 1
    %54 = vsyncpa [#allocation6], 1
    %55 = vsyncpa [#allocation4], 1

</llo_original>
